<compile_context>
chip_gen: v7x
topology: tpu7x:2x2x1
jax: 0.10.0
libtpu: 0.0.40
codegen_flags: <defaults>
</compile_context>

<pallas_src>
import jax
import jax.numpy as jnp
from jax.experimental import pallas as pl
from jax.experimental.pallas import tpu as pltpu


def _round_up(x: int, m: int) -> int:
    return (x + m - 1) // m * m


# Tile + resident-weight budget.  48 MiB leaves headroom even on v7x (64 MiB
# VMEM per TensorCore); v5e/v6e (128 MiB) trivially satisfy it.
_VMEM_CAP_BYTES = 48 * 1024 * 1024


# ----------------------------------------------------------------------------
# Pallas kernel: fused MLP projection  out = SiLU(x @ W1 + b1) @ W2 + b2
#   x tile: (TM, C) source dtype, W1: (C, Dp) bf16, W2: (Dp, Dp) bf16,
#   biases f32, accumulation f32, activation math f32.
# ----------------------------------------------------------------------------
def _mlp_project_kernel(x_ref, w1_ref, b1_ref, w2_ref, b2_ref, o_ref):
    # Cast the row tile to bf16 in-register for the MXU (no wrapper pass).
    x = x_ref[...].astype(jnp.bfloat16)                                 # (TM, C)
    h = jnp.dot(x, w1_ref[...],
                preferred_element_type=jnp.float32) + b1_ref[...]       # (TM, Dp) f32
    # SiLU = h * sigmoid(h): exp on the EUP, approximate reciprocal on the EUP.
    h = h * pl.reciprocal(1.0 + jnp.exp(-h), approx=True)
    out = jnp.dot(h.astype(jnp.bfloat16), w2_ref[...],
                  preferred_element_type=jnp.float32) + b2_ref[...]
    o_ref[...] = out.astype(o_ref.dtype)


def mlp_project(x, w1p, b1p, w2p, b2p, out_dim, *, tm_max=512):
    """x: (M, C)  ->  (M, out_dim).

    w1p: (C, Dp) bf16, w2p: (Dp, Dp) bf16, b1p/b2p: (1, Dp) f32.  Dp is a
    multiple of 128 and all padded rows/columns are exactly zero (set once at
    init), so padded lanes never leak into real outputs.
    """
    M, C = x.shape
    Cw, Dp = w1p.shape
    assert Cw == C and Dp % 128 == 0 and w2p.shape == (Dp, Dp)

    x_bytes = jnp.dtype(x.dtype).itemsize
    out_dtype = x.dtype
    out_bytes = jnp.dtype(out_dtype).itemsize

    # Single-buffered (Buffered(1)) resident weights/biases.
    weight_bytes = (w1p.size + w2p.size) * 2 + (b1p.size + b2p.size) * 4

    if weight_bytes > 40 * 1024 * 1024:
        # Production-size escape hatch (mainly v7x, 64 MiB VMEM): both weights
        # can no longer live resident next to the row tiles.
        # TODO(synk): replace this XLA fallback with a second grid axis that
        # streams W2 in (Dp, TN) column tiles (SiLU intermediate kept in a VMEM
        # scratch under pl.when(j == 0)), or fp8 weights on v7x.
        h = x.astype(jnp.float32) @ w1p.astype(jnp.float32) + b1p
        h = h * jax.nn.sigmoid(h)
        out = (h @ w2p.astype(jnp.float32) + b2p).astype(out_dtype)
        return out[:, :out_dim] if Dp != out_dim else out

    # ---- row-tile selection --------------------------------------------------
    # Minimum 16 rows (bf16 packs 2 rows per sublane).  cdiv grid: no row
    # padding; the partial last block's out-of-bounds rows are never stored and
    # the kernel performs no cross-row reduction, so garbage rows are harmless.
    if M < 16:
        tm = M                               # full-dim block: exempt from 8/16 rule
    else:
        tm = min(tm_max, _round_up(M, 16))
        while tm > 16 and (weight_bytes
                           + 2 * tm * (C * x_bytes + Dp * out_bytes)) > _VMEM_CAP_BYTES:
            tm = max(16, _round_up(tm // 2, 16))
    steps = int(pl.cdiv(M, tm))
    # v7x megacore: "parallel" shards the grid across 2 TensorCores; an odd
    # step count gives a 2:1 imbalance -> rebalance the tile size.
    if steps > 1 and steps % 2 == 1:
        tm_even = _round_up(int(pl.cdiv(M, steps + 1)), 16)
        if 16 <= tm_even < tm:
            tm = tm_even
            steps = int(pl.cdiv(M, tm))

    footprint = weight_bytes + 2 * tm * (C * x_bytes + Dp * out_bytes)
    vmem_limit = min(int(footprint) + 16 * 1024 * 1024, 56 * 1024 * 1024)

    cost = pl.CostEstimate(
        flops=2 * M * (C + Dp) * Dp,
        transcendentals=M * Dp,
        bytes_accessed=M * C * x_bytes + weight_bytes + M * Dp * out_bytes,
    )

    out = pl.pallas_call(
        _mlp_project_kernel,
        out_shape=jax.ShapeDtypeStruct((M, Dp), out_dtype),
        grid_spec=pltpu.PrefetchScalarGridSpec(
            num_scalar_prefetch=0,
            grid=(steps,),
            in_specs=[
                # x row tile: full unpadded C as last dim (exempt from the
                # 128-multiple rule); double-buffered against the matmuls.
                pl.BlockSpec((tm, C), lambda i: (i, 0)),
                # Weights/biases: constant block index -> VMEM-resident across
                # the whole grid; Buffered(1) halves their VMEM footprint.
                pl.BlockSpec((C, Dp), lambda i: (0, 0), pipeline_mode=pl.Buffered(1)),
                pl.BlockSpec((1, Dp), lambda i: (0, 0), pipeline_mode=pl.Buffered(1)),
                pl.BlockSpec((Dp, Dp), lambda i: (0, 0), pipeline_mode=pl.Buffered(1)),
                pl.BlockSpec((1, Dp), lambda i: (0, 0), pipeline_mode=pl.Buffered(1)),
            ],
            out_specs=pl.BlockSpec((tm, Dp), lambda i: (i, 0)),
        ),
        compiler_params=pltpu.CompilerParams(
            dimension_semantics=("parallel",),     # megacore sharding on v7x
            vmem_limit_bytes=vmem_limit,           # derived from footprint
        ),
        cost_estimate=cost,
    )(x, w1p, b1p, w2p, b2p)

    # Padded lanes (exact zeros) are dropped only when output_dim is not a
    # multiple of 128; production callers with 128-multiple output_dim pay no
    # extra pass here.  Output dtype already matches x.dtype (no cast pass).
    return out[:, :out_dim] if Dp != out_dim else out


# ----------------------------------------------------------------------------
# Conditioner (projection='mlp', uncond_type='learned')
# ----------------------------------------------------------------------------
class Conditioner:
    def __init__(self, output_dim, name, cond_dim=None, key=None):
        self.name = name
        self.output_dim = output_dim
        self.cond_dim = cond_dim = cond_dim or output_dim

        if key is None:
            key = jax.random.PRNGKey(0)
        k1, k2, k3, k4 = jax.random.split(key, 4)

        # PyTorch nn.Linear default init: U(-1/sqrt(fan_in), 1/sqrt(fan_in)).
        bound1 = 1.0 / jnp.sqrt(cond_dim)
        bound2 = 1.0 / jnp.sqrt(output_dim)
        # Stored (in, out) so the kernel computes x @ W (matches torch x @ W.T).
        self.w1 = jax.random.uniform(k1, (cond_dim, output_dim), jnp.float32,
                                     -bound1, bound1)
        self.b1 = jax.random.uniform(k2, (1, output_dim), jnp.float32,
                                     -bound1, bound1)
        self.w2 = jax.random.uniform(k3, (output_dim, output_dim), jnp.float32,
                                     -bound2, bound2)
        self.b2 = jax.random.uniform(k4, (1, output_dim), jnp.float32,
                                     -bound2, bound2)
        # uncond_type='learned' -> zeros(output_dim)
        self.uncond_vector = jnp.zeros((output_dim,), jnp.float32)

        # One-time lane padding of the OUTPUT feature dim to a multiple of 128
        # (contraction dim of W1 stays unpadded = cond_dim).  Zero padding keeps
        # padded lanes exactly 0 through SiLU and the second matmul.
        Dp = _round_up(output_dim, 128)
        self._w1p = jnp.pad(self.w1, ((0, 0), (0, Dp - output_dim))).astype(jnp.bfloat16)
        self._b1p = jnp.pad(self.b1, ((0, 0), (0, Dp - output_dim)))
        self._w2p = jnp.pad(self.w2, ((0, Dp - output_dim),
                                      (0, Dp - output_dim))).astype(jnp.bfloat16)
        self._b2p = jnp.pad(self.b2, ((0, 0), (0, Dp - output_dim)))

    def apply_cond(self, cond):
        # Pass-through conditioner (the base class leaves this abstract).
        return cond

    def forward(self, inputs):
        if inputs is None:
            # matches torch: uncond_vector.data.view(1, 1, -1)
            return self.uncond_vector.reshape(1, 1, -1)
        cond = self.apply_cond(*inputs)                      # (B, S, cond_dim)
        B, S, C = cond.shape
        flat = cond.reshape(B * S, C)
        out = mlp_project(flat, self._w1p, self._b1p, self._w2p, self._b2p,
                          self.output_dim)
        return out.reshape(B, S, self.output_dim)

    __call__ = forward


# ----------------------------------------------------------------------------
def _reference(cond, w1, b1, w2, b2):
    h = cond @ w1 + b1[0]
    h = h * jax.nn.sigmoid(h)
    return h @ w2 + b2[0]


if __name__ == "__main__":
    key = jax.random.PRNGKey(0)
    k_param, k_x, k_x2 = jax.random.split(key, 3)

    B, S, cond_dim, output_dim = 2, 8, 32, 32
    conditioner = Conditioner(output_dim, "synthetic", cond_dim=cond_dim,
                              key=k_param)

    # -- Conditional path (Pallas kernel), small demo shape --------------------
    x = jax.random.normal(k_x, (B, S, cond_dim), jnp.float32)
    out = jax.block_until_ready(conditioner((x,)))
    assert out.shape == (B, S, output_dim)

    ref = _reference(x, conditioner.w1, conditioner.b1,
                     conditioner.w2, conditioner.b2)
    # bf16 matmul inputs + approx-reciprocal SiLU vs all-f32 reference.
    assert jnp.allclose(out, ref, atol=2e-2, rtol=2e-2), (
        float(jnp.max(jnp.abs(out - ref))))

    # -- Multi-tile path: cdiv grid with a partial last block ------------------
    S2 = 300                                   # M = 600 -> TM=512, 2 steps, tail=88
    x2 = jax.random.normal(k_x2, (B, S2, cond_dim), jnp.float32)
    out2 = jax.block_until_ready(conditioner((x2,)))
    ref2 = _reference(x2, conditioner.w1, conditioner.b1,
                      conditioner.w2, conditioner.b2)
    assert out2.shape == (B, S2, output_dim)
    assert jnp.allclose(out2, ref2, atol=2e-2, rtol=2e-2), (
        float(jnp.max(jnp.abs(out2 - ref2))))

    # -- Unconditional path (learned uncond vector) -----------------------------
    unc = jax.block_until_ready(conditioner(None))
    assert unc.shape == (1, 1, output_dim)

    print("KERNEL_OK")
</pallas_src>

<mosaic_0001>
module attributes {stable_mosaic.version = 11 : i64} {
  func.func @_mlp_project_kernel(%arg0: i32, %arg1: memref<16x32xf32, #tpu.memory_space<vmem>>, %arg2: memref<32x128xbf16, #tpu.memory_space<vmem>>, %arg3: memref<1x128xf32, #tpu.memory_space<vmem>>, %arg4: memref<128x128xbf16, #tpu.memory_space<vmem>>, %arg5: memref<1x128xf32, #tpu.memory_space<vmem>>, %arg6: memref<16x128xf32, #tpu.memory_space<vmem>>) attributes {dimension_semantics = [#tpu.dimension_semantics<parallel>], iteration_bounds = array<i64: 1>, scalar_prefetch = 0 : i64, scratch_operands = 0 : i64, tpu.core_type = #tpu.core_type<tc>, window_params = [{transform_indices = @transform_0, window_bounds = array<i64: 16, 32>}, {pipeline_mode = #tpu.pipeline_mode<synchronous>, transform_indices = @transform_1, window_bounds = array<i64: 32, 128>}, {pipeline_mode = #tpu.pipeline_mode<synchronous>, transform_indices = @transform_2, window_bounds = array<i64: 1, 128>}, {pipeline_mode = #tpu.pipeline_mode<synchronous>, transform_indices = @transform_3, window_bounds = array<i64: 128, 128>}, {pipeline_mode = #tpu.pipeline_mode<synchronous>, transform_indices = @transform_4, window_bounds = array<i64: 1, 128>}, {transform_indices = @transform_5, window_bounds = array<i64: 16, 128>}]} {
    %c0 = arith.constant 0 : index
    %c0_0 = arith.constant 0 : index
    %0 = vector.load %arg1[%c0, %c0_0] : memref<16x32xf32, #tpu.memory_space<vmem>>, vector<16x32xf32>
    %1 = arith.truncf %0 : vector<16x32xf32> to vector<16x32xbf16>
    %c0_1 = arith.constant 0 : index
    %c0_2 = arith.constant 0 : index
    %2 = vector.load %arg2[%c0_1, %c0_2] : memref<32x128xbf16, #tpu.memory_space<vmem>>, vector<32x128xbf16>
    %cst = arith.constant dense<0.000000e+00> : vector<16x128xf32>
    %3 = tpu.matmul %1, %2, %cst {dimension_numbers = #tpu.dot_dimension_numbers<[1], [0], [0], [1], [0, 0, 1, 1], [], []>} : vector<16x32xbf16>, vector<32x128xbf16>, vector<16x128xf32> -> vector<16x128xf32>
    %c0_3 = arith.constant 0 : index
    %c0_4 = arith.constant 0 : index
    %4 = vector.load %arg3[%c0_3, %c0_4] : memref<1x128xf32, #tpu.memory_space<vmem>>, vector<1x128xf32>
    %5 = vector.broadcast %4 : vector<1x128xf32> to vector<16x128xf32>
    %6 = arith.addf %3, %5 : vector<16x128xf32>
    %cst_5 = arith.constant 0.000000e+00 : f32
    %7 = vector.broadcast %cst_5 : f32 to vector<16x128xf32>
    %8 = arith.subf %7, %6 : vector<16x128xf32>
    %9 = math.exp %8 : vector<16x128xf32>
    %cst_6 = arith.constant 1.000000e+00 : f32
    %10 = vector.broadcast %cst_6 : f32 to vector<16x128xf32>
    %11 = arith.addf %10, %9 : vector<16x128xf32>
    %12 = tpu.reciprocal %11 {approx = true} : vector<16x128xf32> -> vector<16x128xf32>
    %13 = arith.mulf %6, %12 : vector<16x128xf32>
    %14 = arith.truncf %13 : vector<16x128xf32> to vector<16x128xbf16>
    %c0_7 = arith.constant 0 : index
    %c0_8 = arith.constant 0 : index
    %15 = vector.load %arg4[%c0_7, %c0_8] : memref<128x128xbf16, #tpu.memory_space<vmem>>, vector<128x128xbf16>
    %cst_9 = arith.constant dense<0.000000e+00> : vector<16x128xf32>
    %16 = tpu.matmul %14, %15, %cst_9 {dimension_numbers = #tpu.dot_dimension_numbers<[1], [0], [0], [1], [0, 0, 1, 1], [], []>} : vector<16x128xbf16>, vector<128x128xbf16>, vector<16x128xf32> -> vector<16x128xf32>
    %c0_10 = arith.constant 0 : index
    %c0_11 = arith.constant 0 : index
    %17 = vector.load %arg5[%c0_10, %c0_11] : memref<1x128xf32, #tpu.memory_space<vmem>>, vector<1x128xf32>
    %18 = vector.broadcast %17 : vector<1x128xf32> to vector<16x128xf32>
    %19 = arith.addf %16, %18 : vector<16x128xf32>
    %c0_12 = arith.constant 0 : index
    %c0_13 = arith.constant 0 : index
    %20 = vector.load %arg6[%c0_12, %c0_13] : memref<16x128xf32, #tpu.memory_space<vmem>>, vector<16x128xf32>
    tpu.vector_store %arg6[%c0_12, %c0_13], %19 {strides = array<i32>} : memref<16x128xf32, #tpu.memory_space<vmem>>, vector<16x128xf32>,
    return
  }
  func.func @transform_0(%arg0: i32) -> (i32, i32) {
    %c0_i32 = arith.constant 0 : i32
    %c0_i32_0 = arith.constant 0 : i32
    return %arg0, %c0_i32 : i32, i32
  }
  func.func @transform_1(%arg0: i32) -> (i32, i32) {
    %c0_i32 = arith.constant 0 : i32
    %c0_i32_0 = arith.constant 0 : i32
    %c0_i32_1 = arith.constant 0 : i32
    return %c0_i32, %c0_i32_0 : i32, i32
  }
  func.func @transform_2(%arg0: i32) -> (i32, i32) {
    %c0_i32 = arith.constant 0 : i32
    %c0_i32_0 = arith.constant 0 : i32
    %c0_i32_1 = arith.constant 0 : i32
    return %c0_i32, %c0_i32_0 : i32, i32
  }
  func.func @transform_3(%arg0: i32) -> (i32, i32) {
    %c0_i32 = arith.constant 0 : i32
    %c0_i32_0 = arith.constant 0 : i32
    %c0_i32_1 = arith.constant 0 : i32
    return %c0_i32, %c0_i32_0 : i32, i32
  }
  func.func @transform_4(%arg0: i32) -> (i32, i32) {
    %c0_i32 = arith.constant 0 : i32
    %c0_i32_0 = arith.constant 0 : i32
    %c0_i32_1 = arith.constant 0 : i32
    return %c0_i32, %c0_i32_0 : i32, i32
  }
  func.func @transform_5(%arg0: i32) -> (i32, i32) {
    %c0_i32 = arith.constant 0 : i32
    %c0_i32_0 = arith.constant 0 : i32
    return %arg0, %c0_i32 : i32, i32
  }
}

</mosaic_0001>

<llo_original>
// kernel: tpu_custom_call.1
$region0: #{tpu_custom_call.1}
  #allocation0 [shape = 'u32[]', space=smem, size = 0x4, offset = 0x4, fixed_abs, tag = 'smem constant byte address 0x4 - core index']
  #allocation1 [shape = 'u32[144,128]{1,0:T(1,128)}', space=vmem, size = 0x12000, scoped, tag = 'internal scratch']
  %s0 = inlined_call_operand.hbm [shape: f32[16,32], index: 0, kind: input, shape index: {}]
  %s1 = inlined_call_operand.hbm [shape: bf16[32,128], index: 1, kind: input, shape index: {}]
  %s2 = inlined_call_operand.vmem [shape: f32[1,128], index: 2, kind: input, shape index: {}]
  %s3 = inlined_call_operand.hbm [shape: bf16[128,128], index: 3, kind: input, shape index: {}]
  %s4 = inlined_call_operand.vmem [shape: f32[1,128], index: 4, kind: input, shape index: {}]
  %s5 = inlined_call_operand.hbm [shape: f32[16,128], index: 5, kind: output, shape index: {}]
  %s6 = sld [smem:[#allocation0]]
  $region42: #{tpu_custom_call.1} parent=0
    _
  %s8 = ssub.s32 1, %s6
  %s9 = scalar_select 0, %s8, %s6
  $region1: #{tpu_custom_call.1} parent=0
    #allocation2 [shape = 'u8[8192]{0}', space=vmem, size = 0x2000, scoped, tag = 'input window, operand 0, single buffered']
    #allocation3 [shape = 's32[1]{0}', space=sflag, size = 0x4, scoped, tag = 'scoped memory for tpu_custom_call.1']
    #allocation4 [shape = 's32[1]{0}', space=sflag, size = 0x4, scoped, tag = 'scoped memory for tpu_custom_call.1']
    #allocation5 [shape = 'u8[8192]{0}', space=vmem, size = 0x2000, scoped, tag = 'input window, operand 1, single buffered']
    #allocation6 [shape = 's32[1]{0}', space=sflag, size = 0x4, scoped, tag = 'scoped memory for tpu_custom_call.1']
    #allocation7 [shape = 'u8[32768]{0}', space=vmem, size = 0x8000, scoped, tag = 'input window, operand 3, single buffered']
    #allocation8 [shape = 'u8[8192]{0}', space=vmem, size = 0x2000, scoped, tag = 'output window, operand 0, single buffered']
    %10 = vsyncpa [#allocation3], 0
    %11 = vsyncpa [#allocation6], 0
    %12 = vsyncpa [#allocation4], 0
    // Predicated region
    $region2: #{tpu_custom_call.1} parent=1 // pred_check
      _
    $region3: #{tpu_custom_call.1} parent=1 // pred_check_branch
      %14 = sbr.rel (0) target = $region5
    $region4: #{tpu_custom_call.1} parent=1 // pred_region
      %s16 = ssub.s32 256, 256
      %17 = vsyncadd [#allocation3], %s16
      %s18 = sshll.u32 [#allocation2], 4
      %s19 = int_to_ptr.vmem [resolvable:$true] %s18
      %24 = dma.hbm_to_vmem [thread:$0]  %s0, 256, %s19, [#allocation3], 128, 128, 8
    $region5: #{tpu_custom_call.1} parent=1 // pred_fallthru
      _
    // Predicated region
    $region6: #{tpu_custom_call.1} parent=1 // pred_check
      _
    $region7: #{tpu_custom_call.1} parent=1 // pred_check_branch
      %26 = sbr.rel (0) target = $region9
    $region8: #{tpu_custom_call.1} parent=1 // pred_region
      %s28 = ssub.s32 256, 256
      %29 = vsyncadd [#allocation6], %s28
      %s30 = sshll.u32 [#allocation5], 4
      %s31 = int_to_ptr.vmem [resolvable:$true] %s30
      %36 = dma.hbm_to_vmem [thread:$0]  %s1, 256, %s31, [#allocation6], 64, 64, 4
    $region9: #{tpu_custom_call.1} parent=1 // pred_fallthru
      _
    // Predicated region
    $region10: #{tpu_custom_call.1} parent=1 // pred_check
      _
    $region11: #{tpu_custom_call.1} parent=1 // pred_check_branch
      %38 = sbr.rel (0) target = $region13
    $region12: #{tpu_custom_call.1} parent=1 // pred_region
      _
    $region13: #{tpu_custom_call.1} parent=1 // pred_fallthru
      _
    // Predicated region
    $region14: #{tpu_custom_call.1} parent=1 // pred_check
      _
    $region15: #{tpu_custom_call.1} parent=1 // pred_check_branch
      %40 = sbr.rel (0) target = $region17
    $region16: #{tpu_custom_call.1} parent=1 // pred_region
      %s42 = ssub.s32 1024, 1024
      %43 = vsyncadd [#allocation6], %s42
      %s44 = sshll.u32 [#allocation7], 4
      %s45 = int_to_ptr.vmem [resolvable:$true] %s44
      %50 = dma.hbm_to_vmem [thread:$0]  %s3, 1024, %s45, [#allocation6], 64, 64, 4
    $region17: #{tpu_custom_call.1} parent=1 // pred_fallthru
      _
    // Predicated region
    $region18: #{tpu_custom_call.1} parent=1 // pred_check
      _
    $region19: #{tpu_custom_call.1} parent=1 // pred_check_branch
      %52 = sbr.rel (0) target = $region21
    $region20: #{tpu_custom_call.1} parent=1 // pred_region
      _
    $region21: #{tpu_custom_call.1} parent=1 // pred_fallthru
      _
    // Predicated region
    $region22: #{tpu_custom_call.1} parent=1 // pred_check
      _
    $region23: #{tpu_custom_call.1} parent=1 // pred_check_branch
      %54 = sbr.rel (0) target = $region25
    $region24: #{tpu_custom_call.1} parent=1 // pred_region
      %55 = dma.done [#allocation3], 256
    $region25: #{tpu_custom_call.1} parent=1 // pred_fallthru
      _
    // Predicated region
    $region26: #{tpu_custom_call.1} parent=1 // pred_check
      _
    $region27: #{tpu_custom_call.1} parent=1 // pred_check_branch
      %57 = sbr.rel (0) target = $region29
    $region28: #{tpu_custom_call.1} parent=1 // pred_region
      %58 = dma.done [#allocation6], 256
    $region29: #{tpu_custom_call.1} parent=1 // pred_fallthru
      _
    // Predicated region
    $region30: #{tpu_custom_call.1} parent=1 // pred_check
      _
    $region31: #{tpu_custom_call.1} parent=1 // pred_check_branch
      %60 = sbr.rel (0) target = $region33
    $region32: #{tpu_custom_call.1} parent=1 // pred_region
      %61 = dma.done [#allocation6], 1024
    $region33: #{tpu_custom_call.1} parent=1 // pred_fallthru
      _
    %v63 = vld [vmem:[#allocation2] sm:$0xff]
    %v64 = vld [vmem:[#allocation2 + $0x8] sm:$0xff]
    %v65 = vpack.c.bf16 %v64, %v63
    %v66 = vld [vmem:[#allocation5] sm:$0xf]
    %v67 = vld [vmem:[#allocation5 + $0x4] sm:$0xf]
    %v68 = vld [vmem:[#allocation5 + $0x8] sm:$0xf]
    %v69 = vld [vmem:[#allocation5 + $0xc] sm:$0xf]
    %v70 = vld [vmem:[%s2] sm:$0x1]
    %v72 = vlaneseq
    %v73 = vshrl.u32 %v72, 7
    %v74 = vsub.s32 0, %v73
    %v75 = vrot.slane %v70, %v74
    %v81 = vunpack.c.l.b16 %v66
    %v82 = vunpack.c.l.b16 %v67
    %v83 = vunpack.c.l.b16 %v68
    %v84 = vunpack.c.l.b16 %v69
    %v85 = vpack.c.b16 %v82, %v81
    %v86 = vpack.c.b16 %v84, %v83
    %vm89 = vcmask 261120
    %v91 = vsel %vm89, %v65, 0
    %93 = vmatprep.subr.bf16.mxu0 0
    %94 = vmatpush1.bf16.msra.mxu0 %v85
    %95 = vmatprep.subr.bf16.mxu0 0
    %96 = vmatpush1.bf16.msra.mxu0 %v86
    %97 = vmatprep.subr.bf16.mxu0 0
    %98 = vmatpush1.bf16.msra.mxu0 0
    %99 = vmatprep.subr.bf16.mxu0 0
    %100 = vmatpush1.bf16.msra.mxu0 0
    %101 = vmatprep.subr.bf16.mxu0 0
    %102 = vmatpush1.bf16.msra.mxu0 0
    %103 = vmatprep.subr.bf16.mxu0 0
    %104 = vmatpush1.bf16.msra.mxu0 0
    %105 = vmatprep.subr.bf16.mxu0 0
    %106 = vmatpush1.bf16.msra.mxu0 0
    %107 = vmatprep.subr.bf16.mxu0 0
    %108 = vmatpush1.bf16.msra.mxu0 0
    %109 = vmatprep.subr.bf16.mxu0 0
    %110 = vmatpush1.bf16.msra.mxu0 0
    %111 = vmatprep.subr.bf16.mxu0 0
    %112 = vmatpush1.bf16.msra.mxu0 0
    %113 = vmatprep.subr.bf16.mxu0 0
    %114 = vmatpush1.bf16.msra.mxu0 0
    %115 = vmatprep.subr.bf16.mxu0 0
    %116 = vmatpush1.bf16.msra.mxu0 0
    %117 = vmatprep.subr.bf16.mxu0 0
    %118 = vmatpush1.bf16.msra.mxu0 0
    %119 = vmatprep.subr.bf16.mxu0 0
    %120 = vmatpush1.bf16.msra.mxu0 0
    %121 = vmatprep.subr.bf16.mxu0 0
    %122 = vmatpush1.bf16.msra.mxu0 0
    %123 = vmatprep.subr.bf16.mxu0 0
    %124 = vmatpush1.bf16.msra.mxu0 0
    %125 = vmatprep.mubr.bf16.mxu0 0
    %126 = vmatmul.mubr.bf16.gmra.mrb[0].mxu0 %v91
    %v127 = vpop.f32.mrb[0].mxu0
    %v128 = vadd.f32 %v75, %v127
    %v129 = vpop.f32.mrb[0].mxu0
    %v130 = vpop.f32.mrb[0].mxu0
    %v131 = vadd.f32 %v75, %v130
    %v132 = vpop.f32.mrb[0].mxu0
    %133 = vdwg.mxu0
    %v134 = vsub.f32 0.0, %v128
    %v135 = vsub.f32 0.0, %v131
    %v136 = vmul.f32 %v134, 1.442695
    %v137 = vpow.pop %v136
    %v138 = vmul.f32 %v135, 1.442695
    %v139 = vpow.pop %v138
    %v140 = vadd.f32 %v137, 1.0
    %v141 = vadd.f32 %v139, 1.0
    %v142 = vrcp.pop %v140
    %v143 = vrcp.pop %v141
    %v144 = vmul.f32 %v128, %v142
    %v145 = vmul.f32 %v131, %v143
    %v146 = vpack.c.bf16 %v145, %v144
    %v147 = vld [vmem:[#allocation7] sm:$0xf]
    %v148 = vld [vmem:[#allocation7 + $0x4] sm:$0xf]
    %v149 = vld [vmem:[#allocation7 + $0x8] sm:$0xf]
    %v150 = vld [vmem:[#allocation7 + $0xc] sm:$0xf]
    %v151 = vld [vmem:[#allocation7 + $0x10] sm:$0xf]
    %v152 = vld [vmem:[#allocation7 + $0x14] sm:$0xf]
    %v153 = vld [vmem:[#allocation7 + $0x18] sm:$0xf]
    %v154 = vld [vmem:[#allocation7 + $0x1c] sm:$0xf]
    %v155 = vld [vmem:[#allocation7 + $0x20] sm:$0xf]
    %v156 = vld [vmem:[#allocation7 + $0x24] sm:$0xf]
    %v157 = vld [vmem:[#allocation7 + $0x28] sm:$0xf]
    %v158 = vld [vmem:[#allocation7 + $0x2c] sm:$0xf]
    %v159 = vld [vmem:[#allocation7 + $0x30] sm:$0xf]
    %v160 = vld [vmem:[#allocation7 + $0x34] sm:$0xf]
    %v161 = vld [vmem:[#allocation7 + $0x38] sm:$0xf]
    %v162 = vld [vmem:[#allocation7 + $0x3c] sm:$0xf]
    %v163 = vld [vmem:[%s4] sm:$0x1]
    %v165 = vlaneseq
    %v166 = vshrl.u32 %v165, 7
    %v167 = vsub.s32 0, %v166
    %v168 = vrot.slane %v163, %v167
    %v186 = vunpack.c.l.b16 %v147
    %v187 = vunpack.c.l.b16 %v148
    %v188 = vunpack.c.l.b16 %v149
    %v189 = vunpack.c.l.b16 %v150
    %v190 = vunpack.c.l.b16 %v151
    %v191 = vunpack.c.l.b16 %v152
    %v192 = vunpack.c.l.b16 %v153
    %v193 = vunpack.c.l.b16 %v154
    %v194 = vunpack.c.l.b16 %v155
    %v195 = vunpack.c.l.b16 %v156
    %v196 = vunpack.c.l.b16 %v157
    %v197 = vunpack.c.l.b16 %v158
    %v198 = vunpack.c.l.b16 %v159
    %v199 = vunpack.c.l.b16 %v160
    %v200 = vunpack.c.l.b16 %v161
    %v201 = vunpack.c.l.b16 %v162
    %v202 = vpack.c.b16 %v187, %v186
    %v203 = vpack.c.b16 %v189, %v188
    %v204 = vpack.c.b16 %v191, %v190
    %v205 = vpack.c.b16 %v193, %v192
    %v206 = vpack.c.b16 %v195, %v194
    %v207 = vpack.c.b16 %v197, %v196
    %v208 = vpack.c.b16 %v199, %v198
    %v209 = vpack.c.b16 %v201, %v200
    %218 = vmatprep.subr.bf16.mxu0 0
    %219 = vmatpush1.bf16.msra.mxu0 %v202
    %220 = vmatprep.subr.bf16.mxu0 0
    %221 = vmatpush1.bf16.msra.mxu0 %v203
    %222 = vmatprep.subr.bf16.mxu0 0
    %223 = vmatpush1.bf16.msra.mxu0 %v204
    %224 = vmatprep.subr.bf16.mxu0 0
    %225 = vmatpush1.bf16.msra.mxu0 %v205
    %226 = vmatprep.subr.bf16.mxu0 0
    %227 = vmatpush1.bf16.msra.mxu0 %v206
    %228 = vmatprep.subr.bf16.mxu0 0
    %229 = vmatpush1.bf16.msra.mxu0 %v207
    %230 = vmatprep.subr.bf16.mxu0 0
    %231 = vmatpush1.bf16.msra.mxu0 %v208
    %232 = vmatprep.subr.bf16.mxu0 0
    %233 = vmatpush1.bf16.msra.mxu0 %v209
    %234 = vmatprep.subr.bf16.mxu0 0
    %235 = vmatpush1.bf16.msra.mxu0 0
    %236 = vmatprep.subr.bf16.mxu0 0
    %237 = vmatpush1.bf16.msra.mxu0 0
    %238 = vmatprep.subr.bf16.mxu0 0
    %239 = vmatpush1.bf16.msra.mxu0 0
    %240 = vmatprep.subr.bf16.mxu0 0
    %241 = vmatpush1.bf16.msra.mxu0 0
    %242 = vmatprep.subr.bf16.mxu0 0
    %243 = vmatpush1.bf16.msra.mxu0 0
    %244 = vmatprep.subr.bf16.mxu0 0
    %245 = vmatpush1.bf16.msra.mxu0 0
    %246 = vmatprep.subr.bf16.mxu0 0
    %247 = vmatpush1.bf16.msra.mxu0 0
    %248 = vmatprep.subr.bf16.mxu0 0
    %249 = vmatpush1.bf16.msra.mxu0 0
    %250 = vmatprep.mubr.bf16.mxu0 0
    %251 = vmatmul.mubr.bf16.gmra.mrb[0].mxu0 %v146
    %v252 = vpop.f32.mrb[0].mxu0
    %v253 = vadd.f32 %v168, %v252
    %v254 = vpop.f32.mrb[0].mxu0
    %v255 = vpop.f32.mrb[0].mxu0
    %v256 = vadd.f32 %v168, %v255
    %v257 = vpop.f32.mrb[0].mxu0
    %258 = vdwg.mxu0
    %259 = vst [vmem:[#allocation8] sm:$0xff] %v253
    %260 = vst [vmem:[#allocation8 + $0x8] sm:$0xff] %v256
    // Predicated region
    $region34: #{tpu_custom_call.1} parent=1 // pred_check
      _
    $region35: #{tpu_custom_call.1} parent=1 // pred_check_branch
      %262 = sbr.rel (0) target = $region37
    $region36: #{tpu_custom_call.1} parent=1 // pred_region
      %s264 = ssub.s32 256, 256
      %265 = vsyncadd [#allocation4], %s264
      %s266 = sshll.u32 [#allocation8], 4
      %s267 = int_to_ptr.vmem [resolvable:$true] %s266
      %272 = dma.vmem_to_hbm [thread:$0]  %s267, 256, %s5, [#allocation4], 128, 128, 8
    $region37: #{tpu_custom_call.1} parent=1 // pred_fallthru
      _
    // Predicated region
    $region38: #{tpu_custom_call.1} parent=1 // pred_check
      _
    $region39: #{tpu_custom_call.1} parent=1 // pred_check_branch
      %274 = sbr.rel (0) target = $region41
    $region40: #{tpu_custom_call.1} parent=1 // pred_region
      %275 = dma.done [#allocation4], 256
    $region41: #{tpu_custom_call.1} parent=1 // pred_fallthru
      _
    %276 = vsyncpa [#allocation3], 1
    %277 = vsyncpa [#allocation6], 1
    %278 = vsyncpa [#allocation4], 1

</llo_original>
